<compile_context>
chip_gen: v7x
topology: tpu7x:2x2x1
jax: 0.10.0
libtpu: 0.0.40
codegen_flags: <defaults>
</compile_context>

<pallas_src>
import functools

import jax
import jax.numpy as jnp
from jax.experimental import pallas as pl
from jax.experimental.pallas import tpu as pltpu

LN_EPS = 1e-5  # PyTorch nn.LayerNorm default


def _linear_cross_attn_kernel(
    x_ref,     # (Kb, T, D)   selected input batches, sequence-major
    xf_ref,    # (Kb, N, L2)  selected condition batches
    mask_ref,  # (D, D)       block-diagonal head mask (constant across steps)
    g1_ref,    # (1, D)   LayerNorm(latent) gamma
    b1_ref,    # (1, D)   LayerNorm(latent) beta
    g2_ref,    # (1, L2)  LayerNorm(text) gamma
    b2_ref,    # (1, L2)  LayerNorm(text) beta
    wq_ref,    # (D, D)   query weight, stored (in, out)
    bq_ref,    # (1, D)
    wk_ref,    # (L2, D)
    bk_ref,    # (1, D)
    wv_ref,    # (L2, D)
    bv_ref,    # (1, D)
    o_ref,     # (Kb, T, D)   x + attention(x, xf)
    *,
    mxu_dtype,
    approx_recip: bool,
):
    f32 = jnp.float32
    Kb, T, D = x_ref.shape
    N, L2 = xf_ref.shape[1], xf_ref.shape[2]

    x = x_ref[...].astype(f32)       # (Kb, T, D)  original (for the residual)
    xf = xf_ref[...].astype(f32)     # (Kb, N, L2)
    mask = mask_ref[...]             # (D, D) f32, 1 iff same head

    def mm(a, w):
        """2-D matmul on the MXU: bf16 (or f32) inputs, f32 accumulation."""
        return jnp.dot(a.astype(mxu_dtype), w.astype(mxu_dtype),
                       preferred_element_type=f32)

    def recip(d):
        if approx_recip:
            return pl.reciprocal(d, approx=True)   # EUP slot; frees the VALU
        return 1.0 / d

    # ---- LayerNorms (f32 VPU math on all generations) -----------------------
    x2 = x.reshape(Kb * T, D)
    mu = jnp.mean(x2, axis=-1, keepdims=True)
    var = jnp.mean(jnp.square(x2 - mu), axis=-1, keepdims=True)
    xn = (x2 - mu) * jax.lax.rsqrt(var + LN_EPS) * g1_ref[...] + b1_ref[...]

    xf2 = xf.reshape(Kb * N, L2)
    mu2 = jnp.mean(xf2, axis=-1, keepdims=True)
    var2 = jnp.mean(jnp.square(xf2 - mu2), axis=-1, keepdims=True)
    xfn = (xf2 - mu2) * jax.lax.rsqrt(var2 + LN_EPS) * g2_ref[...] + b2_ref[...]

    # ---- Projections (MXU) ---------------------------------------------------
    q = mm(xn, wq_ref[...]) + bq_ref[...]       # (Kb*T, D)
    k = mm(xfn, wk_ref[...]) + bk_ref[...]      # (Kb*N, D)
    v = mm(xfn, wv_ref[...]) + bv_ref[...]      # (Kb*N, D)

    # ---- q: per-head softmax over the feature axis ---------------------------
    # Subtracting the global per-row max over all D is mathematically identical
    # to the per-head max; per-head sums are broadcast with a single MXU dot
    # against the block-diagonal mask (no Dh-wide lane slivers).  The clamp
    # guards 0/0 -> NaN if an entire head underflows relative to the global max.
    q = jnp.exp(q - jnp.max(q, axis=-1, keepdims=True))
    qsum = mm(q, mask)                                      # per-head sums
    q = q * recip(jnp.maximum(qsum, 1e-30))                 # (Kb*T, D)

    # ---- k: softmax over the condition-sequence axis (per batch & feature) ---
    k3 = k.reshape(Kb, N, D)
    k3 = jnp.exp(k3 - jnp.max(k3, axis=1, keepdims=True))
    k3 = k3 * recip(jnp.sum(k3, axis=1, keepdims=True))     # (Kb, N, D)
    v3 = v.reshape(Kb, N, D)

    # ---- Linear attention -----------------------------------------------------
    # attn[b, d, l] = sum_n k[b, n, d] * v[b, n, l], restricted to same-head
    # (d, l) pairs via the block-diagonal mask.  Batched MXU dot.
    attn = jnp.einsum("bnd,bnl->bdl",
                      k3.astype(mxu_dtype), v3.astype(mxu_dtype),
                      preferred_element_type=f32) * mask    # (Kb, D, D)

    # y[b, t, l] = sum_d q[b, t, d] * attn[b, d, l]
    y = jnp.einsum("btd,bdl->btl",
                   q.reshape(Kb, T, D).astype(mxu_dtype), attn.astype(mxu_dtype),
                   preferred_element_type=f32)              # (Kb, T, D)

    # Residual add in f32, single full-block store.
    o_ref[...] = (x + y).astype(o_ref.dtype)


@functools.partial(jax.jit, static_argnames=("num_heads", "precise"))
def residual_cross_attention_layer(input_tensor, condition_tensor, cond_indices,
                                   params, *, num_heads, precise=False):
    """input_tensor: (B, D, L); condition_tensor: (B, N, L2); cond_indices: (K,)."""
    K = cond_indices.shape[0]
    if K == 0:
        return input_tensor

    B, D, L = input_tensor.shape
    N, L2 = condition_tensor.shape[1], condition_tensor.shape[2]
    T = L
    assert D % num_heads == 0
    Dh = D // num_heads

    # Wrapper-side gather of the selected batches into a contiguous buffer so
    # the kernel can process Kb batches per grid step (layout plumbing done by
    # XLA; the kernel then works on a packed (Kb*T, D) slab).
    xg = jnp.transpose(input_tensor[cond_indices], (0, 2, 1))   # (K, T, D)
    xfg = condition_tensor[cond_indices]                        # (K, N, L2)

    # Batches per grid step: enough rows to fill the MXU/VPU and amortise the
    # per-grid-step overhead, capped by K.  Re-derive against 64 MiB VMEM (v7x)
    # when scaling D / L.
    Kb = min(K, max(1, 128 // max(T, 1)))
    Kp = ((K + Kb - 1) // Kb) * Kb
    if Kp != K:  # pad with zero batches; their outputs are discarded below
        xg = jnp.pad(xg, ((0, Kp - K), (0, 0), (0, 0)))
        xfg = jnp.pad(xfg, ((0, Kp - K), (0, 0), (0, 0)))

    # Block-diagonal head mask, built once in the wrapper (not per grid step).
    head = jnp.arange(D, dtype=jnp.int32) // Dh
    mask = (head[:, None] == head[None, :]).astype(jnp.float32)  # (D, D)

    g1 = params["g1"].reshape(1, D)
    b1 = params["b1"].reshape(1, D)
    g2 = params["g2"].reshape(1, L2)
    b2 = params["b2"].reshape(1, L2)
    bq = params["bq"].reshape(1, D)
    bk = params["bk"].reshape(1, D)
    bv = params["bv"].reshape(1, D)

    mxu_dtype = jnp.float32 if precise else jnp.bfloat16
    kernel = functools.partial(_linear_cross_attn_kernel,
                               mxu_dtype=mxu_dtype,
                               approx_recip=not precise)

    def full(shape):
        return pl.BlockSpec(shape, lambda i: (0,) * len(shape))

    out = pl.pallas_call(
        kernel,
        out_shape=jax.ShapeDtypeStruct((Kp, T, D), input_tensor.dtype),
        grid=(Kp // Kb,),
        in_specs=[
            pl.BlockSpec((Kb, T, D), lambda i: (i, 0, 0)),    # gathered x
            pl.BlockSpec((Kb, N, L2), lambda i: (i, 0, 0)),   # gathered xf
            full((D, D)),                   # head mask (VMEM-resident)
            full((1, D)), full((1, D)),     # g1, b1
            full((1, L2)), full((1, L2)),   # g2, b2
            full((D, D)), full((1, D)),     # wq, bq
            full((L2, D)), full((1, D)),    # wk, bk
            full((L2, D)), full((1, D)),    # wv, bv
        ],
        out_specs=pl.BlockSpec((Kb, T, D), lambda i: (i, 0, 0)),
        compiler_params=pltpu.CompilerParams(
            # Each grid step writes a disjoint output block, so "parallel" is
            # safe on v7x's two TensorCores even with duplicate cond_indices.
            dimension_semantics=("parallel",),
            # Explicit VMEM budget (<= scoped/physical limits on v5e/v6e/v7x).
            vmem_limit_bytes=32 * 1024 * 1024,
        ),
    )(xg, xfg, mask, g1, b1, g2, b2,
      params["wq"], bq, params["wk"], bk, params["wv"], bv)

    # Scatter the residual result back into the original buffer.  Duplicate
    # indices: one write wins, matching PyTorch's in-place advanced-indexing
    # assignment semantics.
    res = jnp.transpose(out[:K], (0, 2, 1)).astype(input_tensor.dtype)  # (K, D, L)
    return input_tensor.at[cond_indices].set(res)


def _reference(input_tensor, condition_tensor, cond_indices, p, H):
    """Pure-JAX reference of the PyTorch forward (eval mode)."""
    if cond_indices.size == 0:
        return input_tensor
    x = jnp.transpose(input_tensor[cond_indices], (0, 2, 1)).astype(jnp.float32)
    xf = condition_tensor[cond_indices].astype(jnp.float32)

    def ln(v, g, b):
        mu = v.mean(-1, keepdims=True)
        var = ((v - mu) ** 2).mean(-1, keepdims=True)
        return (v - mu) / jnp.sqrt(var + LN_EPS) * g + b

    xn = ln(x, p["g1"], p["b1"])
    xfn = ln(xf, p["g2"], p["b2"])
    q = xn @ p["wq"] + p["bq"]
    k = xfn @ p["wk"] + p["bk"]
    v = xfn @ p["wv"] + p["bv"]
    Bs, T, D = q.shape
    N = k.shape[1]
    Dh = D // H
    q = jax.nn.softmax(q.reshape(Bs, T, H, Dh), axis=-1)
    k = jax.nn.softmax(k.reshape(Bs, N, H, Dh), axis=1)
    v = v.reshape(Bs, N, H, Dh)
    attn = jnp.einsum("bnhd,bnhl->bhdl", k, v)
    y = jnp.einsum("bnhd,bhdl->bnhl", q, attn).reshape(Bs, T, D)
    out = (x + y).astype(input_tensor.dtype)
    return input_tensor.at[cond_indices].set(jnp.transpose(out, (0, 2, 1)))


if __name__ == "__main__":
    # Small shapes: B=2, dim1=D=32, dim2=24, num_heads=8 (head_dim=4),
    # input sequence L=T=16, condition sequence N=8.
    B, D, L = 2, 32, 16
    N, L2 = 8, 24
    H = 8

    key = jax.random.PRNGKey(0)
    keys = jax.random.split(key, 10)

    input_tensor = jax.random.normal(keys[0], (B, D, L), dtype=jnp.float32)
    condition_tensor = jax.random.normal(keys[1], (B, N, L2), dtype=jnp.float32)
    cond_indices = jnp.array([1, 0], dtype=jnp.int32)

    # Parameters (PyTorch Linear weights are (out, in); stored here pre-transposed
    # as (in, out) so the kernel computes x @ W + b). LayerNorm: gamma=1, beta=0.
    params = {
        "g1": jnp.ones((D,), jnp.float32),
        "b1": jnp.zeros((D,), jnp.float32),
        "g2": jnp.ones((L2,), jnp.float32),
        "b2": jnp.zeros((L2,), jnp.float32),
        "wq": 0.08 * jax.random.normal(keys[2], (D, D), jnp.float32),
        "bq": 0.02 * jax.random.normal(keys[3], (D,), jnp.float32),
        "wk": 0.08 * jax.random.normal(keys[4], (L2, D), jnp.float32),
        "bk": 0.02 * jax.random.normal(keys[5], (D,), jnp.float32),
        "wv": 0.08 * jax.random.normal(keys[6], (L2, D), jnp.float32),
        "bv": 0.02 * jax.random.normal(keys[7], (D,), jnp.float32),
    }

    ref = _reference(input_tensor, condition_tensor, cond_indices, params, H)

    # Precise mode (f32 MXU inputs, exact divides): tight tolerance check.
    out_precise = residual_cross_attention_layer(
        input_tensor, condition_tensor, cond_indices, params,
        num_heads=H, precise=True)
    out_precise = jax.block_until_ready(out_precise)
    assert out_precise.shape == input_tensor.shape
    assert jnp.allclose(out_precise, ref, atol=1e-3, rtol=1e-3), \
        "precise-mode mismatch vs reference"

    # Default fast mode (bf16 MXU inputs w/ f32 accumulate, EUP reciprocals):
    # tolerance reflects bf16 dot-input rounding.
    out_fast = residual_cross_attention_layer(
        input_tensor, condition_tensor, cond_indices, params, num_heads=H)
    out_fast = jax.block_until_ready(out_fast)
    assert out_fast.shape == input_tensor.shape
    assert jnp.allclose(out_fast, ref, atol=2e-2, rtol=2e-2), \
        "fast-mode mismatch vs reference"

    print("KERNEL_OK")
</pallas_src>

<mosaic_0001>
module attributes {stable_mosaic.version = 11 : i64} {
  func.func @_linear_cross_attn_kernel(%arg0: i32, %arg1: memref<2x16x32xf32, #tpu.memory_space<vmem>>, %arg2: memref<2x8x24xf32, #tpu.memory_space<vmem>>, %arg3: memref<32x32xf32, #tpu.memory_space<vmem>>, %arg4: memref<1x32xf32, #tpu.memory_space<vmem>>, %arg5: memref<1x32xf32, #tpu.memory_space<vmem>>, %arg6: memref<1x24xf32, #tpu.memory_space<vmem>>, %arg7: memref<1x24xf32, #tpu.memory_space<vmem>>, %arg8: memref<32x32xf32, #tpu.memory_space<vmem>>, %arg9: memref<1x32xf32, #tpu.memory_space<vmem>>, %arg10: memref<24x32xf32, #tpu.memory_space<vmem>>, %arg11: memref<1x32xf32, #tpu.memory_space<vmem>>, %arg12: memref<24x32xf32, #tpu.memory_space<vmem>>, %arg13: memref<1x32xf32, #tpu.memory_space<vmem>>, %arg14: memref<2x16x32xf32, #tpu.memory_space<vmem>>) attributes {dimension_semantics = [#tpu.dimension_semantics<parallel>], iteration_bounds = array<i64: 1>, scalar_prefetch = 0 : i64, scratch_operands = 0 : i64, tpu.core_type = #tpu.core_type<tc>, window_params = [{transform_indices = @transform_0, window_bounds = array<i64: 2, 16, 32>}, {transform_indices = @transform_1, window_bounds = array<i64: 2, 8, 24>}, {pipeline_mode = #tpu.pipeline_mode<synchronous>, transform_indices = @transform_2, window_bounds = array<i64: 32, 32>}, {pipeline_mode = #tpu.pipeline_mode<synchronous>, transform_indices = @transform_3, window_bounds = array<i64: 1, 32>}, {pipeline_mode = #tpu.pipeline_mode<synchronous>, transform_indices = @transform_4, window_bounds = array<i64: 1, 32>}, {pipeline_mode = #tpu.pipeline_mode<synchronous>, transform_indices = @transform_5, window_bounds = array<i64: 1, 24>}, {pipeline_mode = #tpu.pipeline_mode<synchronous>, transform_indices = @transform_6, window_bounds = array<i64: 1, 24>}, {pipeline_mode = #tpu.pipeline_mode<synchronous>, transform_indices = @transform_7, window_bounds = array<i64: 32, 32>}, {pipeline_mode = #tpu.pipeline_mode<synchronous>, transform_indices = @transform_8, window_bounds = array<i64: 1, 32>}, {pipeline_mode = #tpu.pipeline_mode<synchronous>, transform_indices = @transform_9, window_bounds = array<i64: 24, 32>}, {pipeline_mode = #tpu.pipeline_mode<synchronous>, transform_indices = @transform_10, window_bounds = array<i64: 1, 32>}, {pipeline_mode = #tpu.pipeline_mode<synchronous>, transform_indices = @transform_11, window_bounds = array<i64: 24, 32>}, {pipeline_mode = #tpu.pipeline_mode<synchronous>, transform_indices = @transform_12, window_bounds = array<i64: 1, 32>}, {transform_indices = @transform_13, window_bounds = array<i64: 2, 16, 32>}]} {
    %c0 = arith.constant 0 : index
    %c0_0 = arith.constant 0 : index
    %c0_1 = arith.constant 0 : index
    %0 = vector.load %arg1[%c0, %c0_0, %c0_1] : memref<2x16x32xf32, #tpu.memory_space<vmem>>, vector<2x16x32xf32>
    %c0_2 = arith.constant 0 : index
    %c0_3 = arith.constant 0 : index
    %c0_4 = arith.constant 0 : index
    %1 = vector.load %arg2[%c0_2, %c0_3, %c0_4] : memref<2x8x24xf32, #tpu.memory_space<vmem>>, vector<2x8x24xf32>
    %c0_5 = arith.constant 0 : index
    %c0_6 = arith.constant 0 : index
    %2 = vector.load %arg3[%c0_5, %c0_6] : memref<32x32xf32, #tpu.memory_space<vmem>>, vector<32x32xf32>
    %3 = vector.shape_cast %0 : vector<2x16x32xf32> to vector<32x32xf32>
    %cst = arith.constant dense<0.000000e+00> : vector<32xf32>
    %4 = vector.multi_reduction <add>, %3, %cst [1] : vector<32x32xf32> to vector<32xf32>
    %5 = vector.shape_cast %4 : vector<32xf32> to vector<32x1xf32>
    %cst_7 = arith.constant 3.200000e+01 : f32
    %6 = vector.broadcast %cst_7 : f32 to vector<32x1xf32>
    %7 = arith.divf %5, %6 : vector<32x1xf32>
    %8 = vector.broadcast %7 : vector<32x1xf32> to vector<32x32xf32>
    %9 = arith.subf %3, %8 : vector<32x32xf32>
    %10 = arith.mulf %9, %9 : vector<32x32xf32>
    %cst_8 = arith.constant dense<0.000000e+00> : vector<32xf32>
    %11 = vector.multi_reduction <add>, %10, %cst_8 [1] : vector<32x32xf32> to vector<32xf32>
    %12 = vector.shape_cast %11 : vector<32xf32> to vector<32x1xf32>
    %cst_9 = arith.constant 3.200000e+01 : f32
    %13 = vector.broadcast %cst_9 : f32 to vector<32x1xf32>
    %14 = arith.divf %12, %13 : vector<32x1xf32>
    %15 = vector.broadcast %7 : vector<32x1xf32> to vector<32x32xf32>
    %16 = arith.subf %3, %15 : vector<32x32xf32>
    %cst_10 = arith.constant 9.99999974E-6 : f32
    %17 = vector.broadcast %cst_10 : f32 to vector<32x1xf32>
    %18 = arith.addf %14, %17 : vector<32x1xf32>
    %19 = math.rsqrt %18 : vector<32x1xf32>
    %20 = vector.broadcast %19 : vector<32x1xf32> to vector<32x32xf32>
    %21 = arith.mulf %16, %20 : vector<32x32xf32>
    %c0_11 = arith.constant 0 : index
    %c0_12 = arith.constant 0 : index
    %22 = vector.load %arg4[%c0_11, %c0_12] : memref<1x32xf32, #tpu.memory_space<vmem>>, vector<1x32xf32>
    %23 = vector.broadcast %22 : vector<1x32xf32> to vector<32x32xf32>
    %24 = arith.mulf %21, %23 : vector<32x32xf32>
    %c0_13 = arith.constant 0 : index
    %c0_14 = arith.constant 0 : index
    %25 = vector.load %arg5[%c0_13, %c0_14] : memref<1x32xf32, #tpu.memory_space<vmem>>, vector<1x32xf32>
    %26 = vector.broadcast %25 : vector<1x32xf32> to vector<32x32xf32>
    %27 = arith.addf %24, %26 : vector<32x32xf32>
    %28 = vector.shape_cast %1 : vector<2x8x24xf32> to vector<16x24xf32>
    %cst_15 = arith.constant dense<0.000000e+00> : vector<16xf32>
    %29 = vector.multi_reduction <add>, %28, %cst_15 [1] : vector<16x24xf32> to vector<16xf32>
    %30 = vector.shape_cast %29 : vector<16xf32> to vector<16x1xf32>
    %cst_16 = arith.constant 2.400000e+01 : f32
    %31 = vector.broadcast %cst_16 : f32 to vector<16x1xf32>
    %32 = arith.divf %30, %31 : vector<16x1xf32>
    %33 = vector.broadcast %32 : vector<16x1xf32> to vector<16x24xf32>
    %34 = arith.subf %28, %33 : vector<16x24xf32>
    %35 = arith.mulf %34, %34 : vector<16x24xf32>
    %cst_17 = arith.constant dense<0.000000e+00> : vector<16xf32>
    %36 = vector.multi_reduction <add>, %35, %cst_17 [1] : vector<16x24xf32> to vector<16xf32>
    %37 = vector.shape_cast %36 : vector<16xf32> to vector<16x1xf32>
    %cst_18 = arith.constant 2.400000e+01 : f32
    %38 = vector.broadcast %cst_18 : f32 to vector<16x1xf32>
    %39 = arith.divf %37, %38 : vector<16x1xf32>
    %40 = vector.broadcast %32 : vector<16x1xf32> to vector<16x24xf32>
    %41 = arith.subf %28, %40 : vector<16x24xf32>
    %cst_19 = arith.constant 9.99999974E-6 : f32
    %42 = vector.broadcast %cst_19 : f32 to vector<16x1xf32>
    %43 = arith.addf %39, %42 : vector<16x1xf32>
    %44 = math.rsqrt %43 : vector<16x1xf32>
    %45 = vector.broadcast %44 : vector<16x1xf32> to vector<16x24xf32>
    %46 = arith.mulf %41, %45 : vector<16x24xf32>
    %c0_20 = arith.constant 0 : index
    %c0_21 = arith.constant 0 : index
    %47 = vector.load %arg6[%c0_20, %c0_21] : memref<1x24xf32, #tpu.memory_space<vmem>>, vector<1x24xf32>
    %48 = vector.broadcast %47 : vector<1x24xf32> to vector<16x24xf32>
    %49 = arith.mulf %46, %48 : vector<16x24xf32>
    %c0_22 = arith.constant 0 : index
    %c0_23 = arith.constant 0 : index
    %50 = vector.load %arg7[%c0_22, %c0_23] : memref<1x24xf32, #tpu.memory_space<vmem>>, vector<1x24xf32>
    %51 = vector.broadcast %50 : vector<1x24xf32> to vector<16x24xf32>
    %52 = arith.addf %49, %51 : vector<16x24xf32>
    %c0_24 = arith.constant 0 : index
    %c0_25 = arith.constant 0 : index
    %53 = vector.load %arg8[%c0_24, %c0_25] : memref<32x32xf32, #tpu.memory_space<vmem>>, vector<32x32xf32>
    %cst_26 = arith.constant dense<0.000000e+00> : vector<32x32xf32>
    %54 = tpu.matmul %27, %53, %cst_26 {dimension_numbers = #tpu.dot_dimension_numbers<[1], [0], [0], [1], [0, 0, 1, 1], [], []>} : vector<32x32xf32>, vector<32x32xf32>, vector<32x32xf32> -> vector<32x32xf32>
    %c0_27 = arith.constant 0 : index
    %c0_28 = arith.constant 0 : index
    %55 = vector.load %arg9[%c0_27, %c0_28] : memref<1x32xf32, #tpu.memory_space<vmem>>, vector<1x32xf32>
    %56 = vector.broadcast %55 : vector<1x32xf32> to vector<32x32xf32>
    %57 = arith.addf %54, %56 : vector<32x32xf32>
    %c0_29 = arith.constant 0 : index
    %c0_30 = arith.constant 0 : index
    %58 = vector.load %arg10[%c0_29, %c0_30] : memref<24x32xf32, #tpu.memory_space<vmem>>, vector<24x32xf32>
    %cst_31 = arith.constant dense<0.000000e+00> : vector<16x32xf32>
    %59 = tpu.matmul %52, %58, %cst_31 {dimension_numbers = #tpu.dot_dimension_numbers<[1], [0], [0], [1], [0, 0, 1, 1], [], []>} : vector<16x24xf32>, vector<24x32xf32>, vector<16x32xf32> -> vector<16x32xf32>
    %c0_32 = arith.constant 0 : index
    %c0_33 = arith.constant 0 : index
    %60 = vector.load %arg11[%c0_32, %c0_33] : memref<1x32xf32, #tpu.memory_space<vmem>>, vector<1x32xf32>
    %61 = vector.broadcast %60 : vector<1x32xf32> to vector<16x32xf32>
    %62 = arith.addf %59, %61 : vector<16x32xf32>
    %c0_34 = arith.constant 0 : index
    %c0_35 = arith.constant 0 : index
    %63 = vector.load %arg12[%c0_34, %c0_35] : memref<24x32xf32, #tpu.memory_space<vmem>>, vector<24x32xf32>
    %cst_36 = arith.constant dense<0.000000e+00> : vector<16x32xf32>
    %64 = tpu.matmul %52, %63, %cst_36 {dimension_numbers = #tpu.dot_dimension_numbers<[1], [0], [0], [1], [0, 0, 1, 1], [], []>} : vector<16x24xf32>, vector<24x32xf32>, vector<16x32xf32> -> vector<16x32xf32>
    %c0_37 = arith.constant 0 : index
    %c0_38 = arith.constant 0 : index
    %65 = vector.load %arg13[%c0_37, %c0_38] : memref<1x32xf32, #tpu.memory_space<vmem>>, vector<1x32xf32>
    %66 = vector.broadcast %65 : vector<1x32xf32> to vector<16x32xf32>
    %67 = arith.addf %64, %66 : vector<16x32xf32>
    %cst_39 = arith.constant dense<0xFF800000> : vector<32xf32>
    %68 = vector.multi_reduction <maximumf>, %57, %cst_39 [1] : vector<32x32xf32> to vector<32xf32>
    %69 = vector.shape_cast %68 : vector<32xf32> to vector<32x1xf32>
    %70 = vector.broadcast %69 : vector<32x1xf32> to vector<32x32xf32>
    %71 = arith.subf %57, %70 : vector<32x32xf32>
    %72 = math.exp %71 : vector<32x32xf32>
    %cst_40 = arith.constant dense<0.000000e+00> : vector<32x32xf32>
    %73 = tpu.matmul %72, %2, %cst_40 {dimension_numbers = #tpu.dot_dimension_numbers<[1], [0], [0], [1], [0, 0, 1, 1], [], []>} : vector<32x32xf32>, vector<32x32xf32>, vector<32x32xf32> -> vector<32x32xf32>
    %cst_41 = arith.constant 1.000000e-30 : f32
    %74 = vector.broadcast %cst_41 : f32 to vector<32x32xf32>
    %75 = arith.maximumf %73, %74 : vector<32x32xf32>
    %cst_42 = arith.constant 1.000000e+00 : f32
    %76 = vector.broadcast %cst_42 : f32 to vector<32x32xf32>
    %77 = arith.divf %76, %75 : vector<32x32xf32>
    %78 = arith.mulf %72, %77 : vector<32x32xf32>
    %79 = vector.shape_cast %62 : vector<16x32xf32> to vector<2x8x32xf32>
    %cst_43 = arith.constant dense<0xFF800000> : vector<2x32xf32>
    %80 = vector.multi_reduction <maximumf>, %79, %cst_43 [1] : vector<2x8x32xf32> to vector<2x32xf32>
    %81 = vector.shape_cast %80 : vector<2x32xf32> to vector<2x1x32xf32>
    %82 = vector.broadcast %81 : vector<2x1x32xf32> to vector<2x8x32xf32>
    %83 = arith.subf %79, %82 : vector<2x8x32xf32>
    %84 = math.exp %83 : vector<2x8x32xf32>
    %cst_44 = arith.constant dense<0.000000e+00> : vector<2x32xf32>
    %85 = vector.multi_reduction <add>, %84, %cst_44 [1] : vector<2x8x32xf32> to vector<2x32xf32>
    %86 = vector.shape_cast %85 : vector<2x32xf32> to vector<2x1x32xf32>
    %cst_45 = arith.constant 1.000000e+00 : f32
    %87 = vector.broadcast %cst_45 : f32 to vector<2x1x32xf32>
    %88 = arith.divf %87, %86 : vector<2x1x32xf32>
    %89 = vector.broadcast %88 : vector<2x1x32xf32> to vector<2x8x32xf32>
    %90 = arith.mulf %84, %89 : vector<2x8x32xf32>
    %91 = vector.shape_cast %67 : vector<16x32xf32> to vector<2x8x32xf32>
    "tpu.trace_start"() <{level = 10 : i32, message = "bnd,bnl->bdl"}> : () -> ()
    %cst_46 = arith.constant dense<0.000000e+00> : vector<2x32x32xf32>
    %92 = tpu.matmul %90, %91, %cst_46 {dimension_numbers = #tpu.dot_dimension_numbers<[1], [1], [2], [2], [0, 0, 0, 2, 1, 2], [0], [0]>} : vector<2x8x32xf32>, vector<2x8x32xf32>, vector<2x32x32xf32> -> vector<2x32x32xf32>
    "tpu.trace_stop"() : () -> ()
    %93 = vector.shape_cast %2 : vector<32x32xf32> to vector<1x32x32xf32>
    %94 = vector.broadcast %93 : vector<1x32x32xf32> to vector<2x32x32xf32>
    %95 = arith.mulf %92, %94 : vector<2x32x32xf32>
    %96 = vector.shape_cast %78 : vector<32x32xf32> to vector<2x16x32xf32>
    "tpu.trace_start"() <{level = 10 : i32, message = "btd,bdl->btl"}> : () -> ()
    %cst_47 = arith.constant dense<0.000000e+00> : vector<2x16x32xf32>
    %97 = tpu.matmul %96, %95, %cst_47 {dimension_numbers = #tpu.dot_dimension_numbers<[2], [1], [1], [2], [0, 0, 0, 1, 1, 2], [0], [0]>} : vector<2x16x32xf32>, vector<2x32x32xf32>, vector<2x16x32xf32> -> vector<2x16x32xf32>
    "tpu.trace_stop"() : () -> ()
    %98 = arith.addf %0, %97 : vector<2x16x32xf32>
    %c0_48 = arith.constant 0 : index
    %c0_49 = arith.constant 0 : index
    %c0_50 = arith.constant 0 : index
    %99 = vector.load %arg14[%c0_48, %c0_49, %c0_50] : memref<2x16x32xf32, #tpu.memory_space<vmem>>, vector<2x16x32xf32>
    tpu.vector_store %arg14[%c0_48, %c0_49, %c0_50], %98 {strides = array<i32>} : memref<2x16x32xf32, #tpu.memory_space<vmem>>, vector<2x16x32xf32>,
    return
  }
  func.func @transform_0(%arg0: i32) -> (i32, i32, i32) {
    %c0_i32 = arith.constant 0 : i32
    %c0_i32_0 = arith.constant 0 : i32
    %c0_i32_1 = arith.constant 0 : i32
    return %arg0, %c0_i32, %c0_i32_0 : i32, i32, i32
  }
  func.func @transform_1(%arg0: i32) -> (i32, i32, i32) {
    %c0_i32 = arith.constant 0 : i32
    %c0_i32_0 = arith.constant 0 : i32
    %c0_i32_1 = arith.constant 0 : i32
    return %arg0, %c0_i32, %c0_i32_0 : i32, i32, i32
  }
  func.func @transform_2(%arg0: i32) -> (i32, i32) {
    %c0_i32 = arith.constant 0 : i32
    %c0_i32_0 = arith.constant 0 : i32
    %c0_i32_1 = arith.constant 0 : i32
    return %c0_i32, %c0_i32_0 : i32, i32
  }
  func.func @transform_3(%arg0: i32) -> (i32, i32) {
    %c0_i32 = arith.constant 0 : i32
    %c0_i32_0 = arith.constant 0 : i32
    %c0_i32_1 = arith.constant 0 : i32
    return %c0_i32, %c0_i32_0 : i32, i32
  }
  func.func @transform_4(%arg0: i32) -> (i32, i32) {
    %c0_i32 = arith.constant 0 : i32
    %c0_i32_0 = arith.constant 0 : i32
    %c0_i32_1 = arith.constant 0 : i32
    return %c0_i32, %c0_i32_0 : i32, i32
  }
  func.func @transform_5(%arg0: i32) -> (i32, i32) {
    %c0_i32 = arith.constant 0 : i32
    %c0_i32_0 = arith.constant 0 : i32
    %c0_i32_1 = arith.constant 0 : i32
    return %c0_i32, %c0_i32_0 : i32, i32
  }
  func.func @transform_6(%arg0: i32) -> (i32, i32) {
    %c0_i32 = arith.constant 0 : i32
    %c0_i32_0 = arith.constant 0 : i32
    %c0_i32_1 = arith.constant 0 : i32
    return %c0_i32, %c0_i32_0 : i32, i32
  }
  func.func @transform_7(%arg0: i32) -> (i32, i32) {
    %c0_i32 = arith.constant 0 : i32
    %c0_i32_0 = arith.constant 0 : i32
    %c0_i32_1 = arith.constant 0 : i32
    return %c0_i32, %c0_i32_0 : i32, i32
  }
  func.func @transform_8(%arg0: i32) -> (i32, i32) {
    %c0_i32 = arith.constant 0 : i32
    %c0_i32_0 = arith.constant 0 : i32
    %c0_i32_1 = arith.constant 0 : i32
    return %c0_i32, %c0_i32_0 : i32, i32
  }
  func.func @transform_9(%arg0: i32) -> (i32, i32) {
    %c0_i32 = arith.constant 0 : i32
    %c0_i32_0 = arith.constant 0 : i32
    %c0_i32_1 = arith.constant 0 : i32
    return %c0_i32, %c0_i32_0 : i32, i32
  }
  func.func @transform_10(%arg0: i32) -> (i32, i32) {
    %c0_i32 = arith.constant 0 : i32
    %c0_i32_0 = arith.constant 0 : i32
    %c0_i32_1 = arith.constant 0 : i32
    return %c0_i32, %c0_i32_0 : i32, i32
  }
  func.func @transform_11(%arg0: i32) -> (i32, i32) {
    %c0_i32 = arith.constant 0 : i32
    %c0_i32_0 = arith.constant 0 : i32
    %c0_i32_1 = arith.constant 0 : i32
    return %c0_i32, %c0_i32_0 : i32, i32
  }
  func.func @transform_12(%arg0: i32) -> (i32, i32) {
    %c0_i32 = arith.constant 0 : i32
    %c0_i32_0 = arith.constant 0 : i32
    %c0_i32_1 = arith.constant 0 : i32
    return %c0_i32, %c0_i32_0 : i32, i32
  }
  func.func @transform_13(%arg0: i32) -> (i32, i32, i32) {
    %c0_i32 = arith.constant 0 : i32
    %c0_i32_0 = arith.constant 0 : i32
    %c0_i32_1 = arith.constant 0 : i32
    return %arg0, %c0_i32, %c0_i32_0 : i32, i32, i32
  }
}

</mosaic_0001>

<llo_original>
// kernel: residual_cross_attention_layer.1
$region0: #{residual_cross_attention_layer.1}
  #allocation0 [shape = 'u32[]', space=smem, size = 0x4, offset = 0x4, fixed_abs, tag = 'smem constant byte address 0x4 - core index']
  #allocation1 [shape = 'u32[144,128]{1,0:T(1,128)}', space=vmem, size = 0x12000, scoped, tag = 'internal scratch']
  %s0 = inlined_call_operand.vmem [shape: f32[2,16,32], index: 0, kind: input, shape index: {}]
  %s1 = inlined_call_operand.vmem [shape: f32[2,8,24], index: 1, kind: input, shape index: {}]
  %s2 = inlined_call_operand.vmem [shape: f32[32,32], index: 2, kind: input, shape index: {}]
  %s3 = inlined_call_operand.vmem [shape: f32[1,32], index: 3, kind: input, shape index: {}]
  %s4 = inlined_call_operand.vmem [shape: f32[1,32], index: 4, kind: input, shape index: {}]
  %s5 = inlined_call_operand.vmem [shape: f32[1,24], index: 5, kind: input, shape index: {}]
  %s6 = inlined_call_operand.vmem [shape: f32[1,24], index: 6, kind: input, shape index: {}]
  %s7 = inlined_call_operand.vmem [shape: f32[32,32], index: 7, kind: input, shape index: {}]
  %s8 = inlined_call_operand.vmem [shape: f32[1,32], index: 8, kind: input, shape index: {}]
  %s9 = inlined_call_operand.vmem [shape: f32[24,32], index: 9, kind: input, shape index: {}]
  %s10 = inlined_call_operand.vmem [shape: f32[1,32], index: 10, kind: input, shape index: {}]
  %s11 = inlined_call_operand.vmem [shape: f32[24,32], index: 11, kind: input, shape index: {}]
  %s12 = inlined_call_operand.vmem [shape: f32[1,32], index: 12, kind: input, shape index: {}]
  %s13 = inlined_call_operand.vmem [shape: f32[2,16,32], index: 13, kind: output, shape index: {}]
  %s14 = sld [smem:[#allocation0]]
  $region62: #{residual_cross_attention_layer.1} parent=0
    _
  %s16 = ssub.s32 1, %s14
  %s17 = scalar_select 0, %s16, %s14
  // Predicated region
  $region2: #{residual_cross_attention_layer.1} parent=0 // pred_check
    _
  $region3: #{residual_cross_attention_layer.1} parent=0 // pred_check_branch
    %19 = sbr.rel (0) target = $region5
  $region4: #{residual_cross_attention_layer.1} parent=0 // pred_region
    _
  $region5: #{residual_cross_attention_layer.1} parent=0 // pred_fallthru
    _
  // Predicated region
  $region6: #{residual_cross_attention_layer.1} parent=0 // pred_check
    _
  $region7: #{residual_cross_attention_layer.1} parent=0 // pred_check_branch
    %21 = sbr.rel (0) target = $region9
  $region8: #{residual_cross_attention_layer.1} parent=0 // pred_region
    _
  $region9: #{residual_cross_attention_layer.1} parent=0 // pred_fallthru
    _
  // Predicated region
  $region10: #{residual_cross_attention_layer.1} parent=0 // pred_check
    _
  $region11: #{residual_cross_attention_layer.1} parent=0 // pred_check_branch
    %23 = sbr.rel (0) target = $region13
  $region12: #{residual_cross_attention_layer.1} parent=0 // pred_region
    _
  $region13: #{residual_cross_attention_layer.1} parent=0 // pred_fallthru
    _
  // Predicated region
  $region14: #{residual_cross_attention_layer.1} parent=0 // pred_check
    _
  $region15: #{residual_cross_attention_layer.1} parent=0 // pred_check_branch
    %25 = sbr.rel (0) target = $region17
  $region16: #{residual_cross_attention_layer.1} parent=0 // pred_region
    _
  $region17: #{residual_cross_attention_layer.1} parent=0 // pred_fallthru
    _
  // Predicated region
  $region18: #{residual_cross_attention_layer.1} parent=0 // pred_check
    _
  $region19: #{residual_cross_attention_layer.1} parent=0 // pred_check_branch
    %27 = sbr.rel (0) target = $region21
  $region20: #{residual_cross_attention_layer.1} parent=0 // pred_region
    _
  $region21: #{residual_cross_attention_layer.1} parent=0 // pred_fallthru
    _
  // Predicated region
  $region22: #{residual_cross_attention_layer.1} parent=0 // pred_check
    _
  $region23: #{residual_cross_attention_layer.1} parent=0 // pred_check_branch
    %29 = sbr.rel (0) target = $region25
  $region24: #{residual_cross_attention_layer.1} parent=0 // pred_region
    _
  $region25: #{residual_cross_attention_layer.1} parent=0 // pred_fallthru
    _
  // Predicated region
  $region26: #{residual_cross_attention_layer.1} parent=0 // pred_check
    _
  $region27: #{residual_cross_attention_layer.1} parent=0 // pred_check_branch
    %31 = sbr.rel (0) target = $region29
  $region28: #{residual_cross_attention_layer.1} parent=0 // pred_region
    _
  $region29: #{residual_cross_attention_layer.1} parent=0 // pred_fallthru
    _
  // Predicated region
  $region30: #{residual_cross_attention_layer.1} parent=0 // pred_check
    _
  $region31: #{residual_cross_attention_layer.1} parent=0 // pred_check_branch
    %33 = sbr.rel (0) target = $region33
  $region32: #{residual_cross_attention_layer.1} parent=0 // pred_region
    _
  $region33: #{residual_cross_attention_layer.1} parent=0 // pred_fallthru
    _
  // Predicated region
  $region34: #{residual_cross_attention_layer.1} parent=0 // pred_check
    _
  $region35: #{residual_cross_attention_layer.1} parent=0 // pred_check_branch
    %35 = sbr.rel (0) target = $region37
  $region36: #{residual_cross_attention_layer.1} parent=0 // pred_region
    _
  $region37: #{residual_cross_attention_layer.1} parent=0 // pred_fallthru
    _
  // Predicated region
  $region38: #{residual_cross_attention_layer.1} parent=0 // pred_check
    _
  $region39: #{residual_cross_attention_layer.1} parent=0 // pred_check_branch
    %37 = sbr.rel (0) target = $region41
  $region40: #{residual_cross_attention_layer.1} parent=0 // pred_region
    _
  $region41: #{residual_cross_attention_layer.1} parent=0 // pred_fallthru
    _
  // Predicated region
  $region42: #{residual_cross_attention_layer.1} parent=0 // pred_check
    _
  $region43: #{residual_cross_attention_layer.1} parent=0 // pred_check_branch
    %39 = sbr.rel (0) target = $region45
  $region44: #{residual_cross_attention_layer.1} parent=0 // pred_region
    _
  $region45: #{residual_cross_attention_layer.1} parent=0 // pred_fallthru
    _
  // Predicated region
  $region46: #{residual_cross_attention_layer.1} parent=0 // pred_check
    _
  $region47: #{residual_cross_attention_layer.1} parent=0 // pred_check_branch
    %41 = sbr.rel (0) target = $region49
  $region48: #{residual_cross_attention_layer.1} parent=0 // pred_region
    _
  $region49: #{residual_cross_attention_layer.1} parent=0 // pred_fallthru
    _
  // Predicated region
  $region50: #{residual_cross_attention_layer.1} parent=0 // pred_check
    _
  $region51: #{residual_cross_attention_layer.1} parent=0 // pred_check_branch
    %43 = sbr.rel (0) target = $region53
  $region52: #{residual_cross_attention_layer.1} parent=0 // pred_region
    _
  $region53: #{residual_cross_attention_layer.1} parent=0 // pred_fallthru
    _
  %v44 = vld [vmem:[%s0] sm:$0xff]
  %v45 = vld [vmem:[%s0 + $0x8] sm:$0xff]
  %v46 = vld [vmem:[%s0 + $0x10] sm:$0xff]
  %v47 = vld [vmem:[%s0 + $0x18] sm:$0xff]
  %v48 = vld [vmem:[%s1] sm:$0xff]
  %v49 = vld [vmem:[%s1 + $0x8] sm:$0xff]
  %v50 = vld [vmem:[%s2] sm:$0xff]
  %v51 = vld [vmem:[%s2 + $0x8] sm:$0xff]
  %v52 = vld [vmem:[%s2 + $0x10] sm:$0xff]
  %v53 = vld [vmem:[%s2 + $0x18] sm:$0xff]
  %vm54 = vcmask 261120
  %v55 = vsel %vm54, %v44, 0.0
  %56 = vadd.xlane.f32.xlu0 %v55
  %v57 = vpop.xlane.xlu0 %56
  %v58 = vsel %vm54, %v45, 0.0
  %59 = vadd.xlane.f32.xlu0 %v58
  %v60 = vpop.xlane.xlu0 %59
  %v61 = vsel %vm54, %v46, 0.0
  %62 = vadd.xlane.f32.xlu0 %v61
  %v63 = vpop.xlane.xlu0 %62
  %v64 = vsel %vm54, %v47, 0.0
  %65 = vadd.xlane.f32.xlu0 %v64
  %v66 = vpop.xlane.xlu0 %65
  %v67 = vrcp.pop 32.0
  %v68 = vmul.f32 %v57, %v67
  %v69 = vmul.f32 %v60, %v67
  %v70 = vmul.f32 %v63, %v67
  %v71 = vmul.f32 %v66, %v67
  %v72 = vsub.f32 %v44, %v68
  %v73 = vsub.f32 %v45, %v69
  %v74 = vsub.f32 %v46, %v70
  %v75 = vsub.f32 %v47, %v71
  %v76 = vmul.f32 %v72, %v72
  %v77 = vmul.f32 %v73, %v73
  %v78 = vmul.f32 %v74, %v74
  %v79 = vmul.f32 %v75, %v75
  %v80 = vsel %vm54, %v76, 0.0
  %81 = vadd.xlane.f32.xlu0 %v80
  %v82 = vpop.xlane.xlu0 %81
  %v83 = vsel %vm54, %v77, 0.0
  %84 = vadd.xlane.f32.xlu0 %v83
  %v85 = vpop.xlane.xlu0 %84
  %v86 = vsel %vm54, %v78, 0.0
  %87 = vadd.xlane.f32.xlu0 %v86
  %v88 = vpop.xlane.xlu0 %87
  %v89 = vsel %vm54, %v79, 0.0
  %90 = vadd.xlane.f32.xlu0 %v89
  %v91 = vpop.xlane.xlu0 %90
  %v92 = vmul.f32 %v82, %v67
  %v93 = vmul.f32 %v85, %v67
  %v94 = vmul.f32 %v88, %v67
  %v95 = vmul.f32 %v91, %v67
  %v96 = vadd.f32 %v92, 1e-05
  %v97 = vadd.f32 %v93, 1e-05
  %v98 = vadd.f32 %v94, 1e-05
  %v99 = vadd.f32 %v95, 1e-05
  %v100 = vrsqrt.pop %v96
  %v101 = vrsqrt.pop %v97
  %v102 = vrsqrt.pop %v98
  %v103 = vrsqrt.pop %v99
  %v104 = vmul.f32 %v72, %v100
  %v105 = vmul.f32 %v73, %v101
  %v106 = vmul.f32 %v74, %v102
  %v107 = vmul.f32 %v75, %v103
  %v108 = vld [vmem:[%s3] sm:$0x1]
  %v110 = vlaneseq
  %v111 = vshrl.u32 %v110, 7
  %v112 = vsub.s32 0, %v111
  %v113 = vrot.slane %v108, %v112
  %v115 = vmul.f32 %v104, %v113
  %v116 = vmul.f32 %v105, %v113
  %v117 = vmul.f32 %v106, %v113
  %v118 = vmul.f32 %v107, %v113
  %v119 = vld [vmem:[%s4] sm:$0x1]
  %v121 = vlaneseq
  %v122 = vshrl.u32 %v121, 7
  %v123 = vsub.s32 0, %v122
  %v124 = vrot.slane %v119, %v123
  %v126 = vadd.f32 %v115, %v124
  %v127 = vadd.f32 %v116, %v124
  %v128 = vadd.f32 %v117, %v124
  %v129 = vadd.f32 %v118, %v124
  %vm130 = vcmask 195584
  %v131 = vsel %vm130, %v48, 0.0
  %132 = vadd.xlane.f32.xlu0 %v131
  %v133 = vpop.xlane.xlu0 %132
  %v134 = vsel %vm130, %v49, 0.0
  %135 = vadd.xlane.f32.xlu0 %v134
  %v136 = vpop.xlane.xlu0 %135
  %v137 = vrcp.pop 24.0
  %v138 = vmul.f32 %v133, %v137
  %v139 = vmul.f32 %v136, %v137
  %v140 = vsub.f32 %v48, %v138
  %v141 = vsub.f32 %v49, %v139
  %v142 = vmul.f32 %v140, %v140
  %v143 = vmul.f32 %v141, %v141
  %v144 = vsel %vm130, %v142, 0.0
  %145 = vadd.xlane.f32.xlu0 %v144
  %v146 = vpop.xlane.xlu0 %145
  %v147 = vsel %vm130, %v143, 0.0
  %148 = vadd.xlane.f32.xlu0 %v147
  %v149 = vpop.xlane.xlu0 %148
  %v150 = vmul.f32 %v146, %v137
  %v151 = vmul.f32 %v149, %v137
  %v152 = vadd.f32 %v150, 1e-05
  %v153 = vadd.f32 %v151, 1e-05
  %v154 = vrsqrt.pop %v152
  %v155 = vrsqrt.pop %v153
  %v156 = vmul.f32 %v140, %v154
  %v157 = vmul.f32 %v141, %v155
  %v158 = vld [vmem:[%s5] sm:$0x1]
  %v160 = vlaneseq
  %v161 = vshrl.u32 %v160, 7
  %v162 = vsub.s32 0, %v161
  %v163 = vrot.slane %v158, %v162
  %v165 = vmul.f32 %v156, %v163
  %v166 = vmul.f32 %v157, %v163
  %v167 = vld [vmem:[%s6] sm:$0x1]
  %v169 = vlaneseq
  %v170 = vshrl.u32 %v169, 7
  %v171 = vsub.s32 0, %v170
  %v172 = vrot.slane %v167, %v171
  %v174 = vadd.f32 %v165, %v172
  %v175 = vadd.f32 %v166, %v172
  %v176 = vld [vmem:[%s7] sm:$0xff]
  %v177 = vld [vmem:[%s7 + $0x8] sm:$0xff]
  %v178 = vld [vmem:[%s7 + $0x10] sm:$0xff]
  %v179 = vld [vmem:[%s7 + $0x18] sm:$0xff]
  %v180 = vld [vmem:[%s8] sm:$0x1]
  %v182 = vlaneseq
  %v183 = vshrl.u32 %v182, 7
  %v184 = vsub.s32 0, %v183
  %v185 = vrot.slane %v180, %v184
  %v188 = vsel %vm54, %v126, 0
  %v191 = vsel %vm54, %v127, 0
  %v194 = vsel %vm54, %v128, 0
  %v197 = vsel %vm54, %v129, 0
  %199 = vmatprep.subr.mxu0 0.0
  %200 = vmatpush1.msra.mxu0 %v176
  %201 = vmatprep.subr.mxu0 0.0
  %202 = vmatpush1.msra.mxu0 %v177
  %203 = vmatprep.subr.mxu0 0.0
  %204 = vmatpush1.msra.mxu0 %v178
  %205 = vmatprep.subr.mxu0 0.0
  %206 = vmatpush1.msra.mxu0 %v179
  %207 = vmatprep.subr.mxu0 0.0
  %208 = vmatpush1.msra.mxu0 0.0
  %209 = vmatprep.subr.mxu0 0.0
  %210 = vmatpush1.msra.mxu0 0.0
  %211 = vmatprep.subr.mxu0 0.0
  %212 = vmatpush1.msra.mxu0 0.0
  %213 = vmatprep.subr.mxu0 0.0
  %214 = vmatpush1.msra.mxu0 0.0
  %215 = vmatprep.subr.mxu0 0.0
  %216 = vmatpush1.msra.mxu0 0.0
  %217 = vmatprep.subr.mxu0 0.0
  %218 = vmatpush1.msra.mxu0 0.0
  %219 = vmatprep.subr.mxu0 0.0
  %220 = vmatpush1.msra.mxu0 0.0
  %221 = vmatprep.subr.mxu0 0.0
  %222 = vmatpush1.msra.mxu0 0.0
  %223 = vmatprep.subr.mxu0 0.0
  %224 = vmatpush1.msra.mxu0 0.0
  %225 = vmatprep.subr.mxu0 0.0
  %226 = vmatpush1.msra.mxu0 0.0
  %227 = vmatprep.subr.mxu0 0.0
  %228 = vmatpush1.msra.mxu0 0.0
  %229 = vmatprep.subr.mxu0 0.0
  %230 = vmatpush1.msra.mxu0 0.0
  %231 = vmatprep.subr.mxu0 0.0
  %232 = vmatpush1.msra.mxu0 0.0
  %233 = vmatprep.subr.mxu0 0.0
  %234 = vmatpush1.msra.mxu0 0.0
  %235 = vmatprep.subr.mxu0 0.0
  %236 = vmatpush1.msra.mxu0 0.0
  %237 = vmatprep.subr.mxu0 0.0
  %238 = vmatpush1.msra.mxu0 0.0
  %239 = vmatprep.subr.mxu0 0.0
  %240 = vmatpush1.msra.mxu0 0.0
  %241 = vmatprep.subr.mxu0 0.0
  %242 = vmatpush1.msra.mxu0 0.0
  %243 = vmatprep.subr.mxu0 0.0
  %244 = vmatpush1.msra.mxu0 0.0
  %245 = vmatprep.subr.mxu0 0.0
  %246 = vmatpush1.msra.mxu0 0.0
  %247 = vmatprep.subr.mxu0 0.0
  %248 = vmatpush1.msra.mxu0 0.0
  %249 = vmatprep.subr.mxu0 0.0
  %250 = vmatpush1.msra.mxu0 0.0
  %251 = vmatprep.subr.mxu0 0.0
  %252 = vmatpush1.msra.mxu0 0.0
  %253 = vmatprep.subr.mxu0 0.0
  %254 = vmatpush1.msra.mxu0 0.0
  %255 = vmatprep.subr.mxu0 0.0
  %256 = vmatpush1.msra.mxu0 0.0
  %257 = vmatprep.subr.mxu0 0.0
  %258 = vmatpush1.msra.mxu0 0.0
  %259 = vmatprep.subr.mxu0 0.0
  %260 = vmatpush1.msra.mxu0 0.0
  %261 = vmatprep.subr.mxu0 0.0
  %262 = vmatpush1.msra.mxu0 0.0
  %263 = vmatprep.mubr.f32.mxu0 0.0
  %264 = vmatmul.mubr.f32.gmra.mrb[0].mxu0 %v188
  %v265 = vpop.f32.mrb[0].mxu0
  %v266 = vadd.f32 %v185, %v265
  %v267 = vpop.f32.mrb[0].mxu0
  %268 = vmatprep.mubr.f32.mxu0 0.0
  %269 = vmatmul.mubr.f32.gmra.mrb[0].mxu0 %v191
  %v270 = vpop.f32.mrb[0].mxu0
  %v271 = vadd.f32 %v185, %v270
  %v272 = vpop.f32.mrb[0].mxu0
  %273 = vmatprep.mubr.f32.mxu0 0.0
  %274 = vmatmul.mubr.f32.gmra.mrb[0].mxu0 %v194
  %v275 = vpop.f32.mrb[0].mxu0
  %v276 = vadd.f32 %v185, %v275
  %v277 = vpop.f32.mrb[0].mxu0
  %278 = vmatprep.mubr.f32.mxu0 0.0
  %279 = vmatmul.mubr.f32.gmra.mrb[0].mxu0 %v197
  %v280 = vpop.f32.mrb[0].mxu0
  %v281 = vadd.f32 %v185, %v280
  %v282 = vpop.f32.mrb[0].mxu0
  %283 = vdwg.mxu0
  %v284 = vld [vmem:[%s9] sm:$0xff]
  %v285 = vld [vmem:[%s9 + $0x8] sm:$0xff]
  %v286 = vld [vmem:[%s9 + $0x10] sm:$0xff]
  %v287 = vld [vmem:[%s10] sm:$0x1]
  %v289 = vlaneseq
  %v290 = vshrl.u32 %v289, 7
  %v291 = vsub.s32 0, %v290
  %v292 = vrot.slane %v287, %v291
  %v295 = vsel %vm130, %v174, 0
  %v298 = vsel %vm130, %v175, 0
  %300 = vmatprep.subr.mxu0 0.0
  %301 = vmatpush1.msra.mxu0 %v284
  %302 = vmatprep.subr.mxu0 0.0
  %303 = vmatpush1.msra.mxu0 %v285
  %304 = vmatprep.subr.mxu0 0.0
  %305 = vmatpush1.msra.mxu0 %v286
  %306 = vmatprep.subr.mxu0 0.0
  %307 = vmatpush1.msra.mxu0 0.0
  %308 = vmatprep.subr.mxu0 0.0
  %309 = vmatpush1.msra.mxu0 0.0
  %310 = vmatprep.subr.mxu0 0.0
  %311 = vmatpush1.msra.mxu0 0.0
  %312 = vmatprep.subr.mxu0 0.0
  %313 = vmatpush1.msra.mxu0 0.0
  %314 = vmatprep.subr.mxu0 0.0
  %315 = vmatpush1.msra.mxu0 0.0
  %316 = vmatprep.subr.mxu0 0.0
  %317 = vmatpush1.msra.mxu0 0.0
  %318 = vmatprep.subr.mxu0 0.0
  %319 = vmatpush1.msra.mxu0 0.0
  %320 = vmatprep.subr.mxu0 0.0
  %321 = vmatpush1.msra.mxu0 0.0
  %322 = vmatprep.subr.mxu0 0.0
  %323 = vmatpush1.msra.mxu0 0.0
  %324 = vmatprep.subr.mxu0 0.0
  %325 = vmatpush1.msra.mxu0 0.0
  %326 = vmatprep.subr.mxu0 0.0
  %327 = vmatpush1.msra.mxu0 0.0
  %328 = vmatprep.subr.mxu0 0.0
  %329 = vmatpush1.msra.mxu0 0.0
  %330 = vmatprep.subr.mxu0 0.0
  %331 = vmatpush1.msra.mxu0 0.0
  %332 = vmatprep.subr.mxu0 0.0
  %333 = vmatpush1.msra.mxu0 0.0
  %334 = vmatprep.subr.mxu0 0.0
  %335 = vmatpush1.msra.mxu0 0.0
  %336 = vmatprep.subr.mxu0 0.0
  %337 = vmatpush1.msra.mxu0 0.0
  %338 = vmatprep.subr.mxu0 0.0
  %339 = vmatpush1.msra.mxu0 0.0
  %340 = vmatprep.subr.mxu0 0.0
  %341 = vmatpush1.msra.mxu0 0.0
  %342 = vmatprep.subr.mxu0 0.0
  %343 = vmatpush1.msra.mxu0 0.0
  %344 = vmatprep.subr.mxu0 0.0
  %345 = vmatpush1.msra.mxu0 0.0
  %346 = vmatprep.subr.mxu0 0.0
  %347 = vmatpush1.msra.mxu0 0.0
  %348 = vmatprep.subr.mxu0 0.0
  %349 = vmatpush1.msra.mxu0 0.0
  %350 = vmatprep.subr.mxu0 0.0
  %351 = vmatpush1.msra.mxu0 0.0
  %352 = vmatprep.subr.mxu0 0.0
  %353 = vmatpush1.msra.mxu0 0.0
  %354 = vmatprep.subr.mxu0 0.0
  %355 = vmatpush1.msra.mxu0 0.0
  %356 = vmatprep.subr.mxu0 0.0
  %357 = vmatpush1.msra.mxu0 0.0
  %358 = vmatprep.subr.mxu0 0.0
  %359 = vmatpush1.msra.mxu0 0.0
  %360 = vmatprep.subr.mxu0 0.0
  %361 = vmatpush1.msra.mxu0 0.0
  %362 = vmatprep.subr.mxu0 0.0
  %363 = vmatpush1.msra.mxu0 0.0
  %364 = vmatprep.mubr.f32.mxu0 0.0
  %365 = vmatmul.mubr.f32.gmra.mrb[0].mxu0 %v295
  %v366 = vpop.f32.mrb[0].mxu0
  %v367 = vadd.f32 %v292, %v366
  %v368 = vpop.f32.mrb[0].mxu0
  %369 = vmatprep.mubr.f32.mxu0 0.0
  %370 = vmatmul.mubr.f32.gmra.mrb[0].mxu0 %v298
  %v371 = vpop.f32.mrb[0].mxu0
  %v372 = vadd.f32 %v292, %v371
  %v373 = vpop.f32.mrb[0].mxu0
  %374 = vdwg.mxu0
  %v375 = vld [vmem:[%s11] sm:$0xff]
  %v376 = vld [vmem:[%s11 + $0x8] sm:$0xff]
  %v377 = vld [vmem:[%s11 + $0x10] sm:$0xff]
  %v378 = vld [vmem:[%s12] sm:$0x1]
  %v380 = vlaneseq
  %v381 = vshrl.u32 %v380, 7
  %v382 = vsub.s32 0, %v381
  %v383 = vrot.slane %v378, %v382
  %385 = vmatprep.subr.mxu0 0.0
  %386 = vmatpush1.msra.mxu0 %v375
  %387 = vmatprep.subr.mxu0 0.0
  %388 = vmatpush1.msra.mxu0 %v376
  %389 = vmatprep.subr.mxu0 0.0
  %390 = vmatpush1.msra.mxu0 %v377
  %391 = vmatprep.subr.mxu0 0.0
  %392 = vmatpush1.msra.mxu0 0.0
  %393 = vmatprep.subr.mxu0 0.0
  %394 = vmatpush1.msra.mxu0 0.0
  %395 = vmatprep.subr.mxu0 0.0
  %396 = vmatpush1.msra.mxu0 0.0
  %397 = vmatprep.subr.mxu0 0.0
  %398 = vmatpush1.msra.mxu0 0.0
  %399 = vmatprep.subr.mxu0 0.0
  %400 = vmatpush1.msra.mxu0 0.0
  %401 = vmatprep.subr.mxu0 0.0
  %402 = vmatpush1.msra.mxu0 0.0
  %403 = vmatprep.subr.mxu0 0.0
  %404 = vmatpush1.msra.mxu0 0.0
  %405 = vmatprep.subr.mxu0 0.0
  %406 = vmatpush1.msra.mxu0 0.0
  %407 = vmatprep.subr.mxu0 0.0
  %408 = vmatpush1.msra.mxu0 0.0
  %409 = vmatprep.subr.mxu0 0.0
  %410 = vmatpush1.msra.mxu0 0.0
  %411 = vmatprep.subr.mxu0 0.0
  %412 = vmatpush1.msra.mxu0 0.0
  %413 = vmatprep.subr.mxu0 0.0
  %414 = vmatpush1.msra.mxu0 0.0
  %415 = vmatprep.subr.mxu0 0.0
  %416 = vmatpush1.msra.mxu0 0.0
  %417 = vmatprep.subr.mxu0 0.0
  %418 = vmatpush1.msra.mxu0 0.0
  %419 = vmatprep.subr.mxu0 0.0
  %420 = vmatpush1.msra.mxu0 0.0
  %421 = vmatprep.subr.mxu0 0.0
  %422 = vmatpush1.msra.mxu0 0.0
  %423 = vmatprep.subr.mxu0 0.0
  %424 = vmatpush1.msra.mxu0 0.0
  %425 = vmatprep.subr.mxu0 0.0
  %426 = vmatpush1.msra.mxu0 0.0
  %427 = vmatprep.subr.mxu0 0.0
  %428 = vmatpush1.msra.mxu0 0.0
  %429 = vmatprep.subr.mxu0 0.0
  %430 = vmatpush1.msra.mxu0 0.0
  %431 = vmatprep.subr.mxu0 0.0
  %432 = vmatpush1.msra.mxu0 0.0
  %433 = vmatprep.subr.mxu0 0.0
  %434 = vmatpush1.msra.mxu0 0.0
  %435 = vmatprep.subr.mxu0 0.0
  %436 = vmatpush1.msra.mxu0 0.0
  %437 = vmatprep.subr.mxu0 0.0
  %438 = vmatpush1.msra.mxu0 0.0
  %439 = vmatprep.subr.mxu0 0.0
  %440 = vmatpush1.msra.mxu0 0.0
  %441 = vmatprep.subr.mxu0 0.0
  %442 = vmatpush1.msra.mxu0 0.0
  %443 = vmatprep.subr.mxu0 0.0
  %444 = vmatpush1.msra.mxu0 0.0
  %445 = vmatprep.subr.mxu0 0.0
  %446 = vmatpush1.msra.mxu0 0.0
  %447 = vmatprep.subr.mxu0 0.0
  %448 = vmatpush1.msra.mxu0 0.0
  %449 = vmatprep.mubr.f32.mxu0 0.0
  %450 = vmatmul.mubr.f32.gmra.mrb[0].mxu0 %v295
  %v451 = vpop.f32.mrb[0].mxu0
  %v452 = vadd.f32 %v383, %v451
  %v453 = vpop.f32.mrb[0].mxu0
  %454 = vmatprep.mubr.f32.mxu0 0.0
  %455 = vmatmul.mubr.f32.gmra.mrb[0].mxu0 %v298
  %v456 = vpop.f32.mrb[0].mxu0
  %v457 = vadd.f32 %v383, %v456
  %v458 = vpop.f32.mrb[0].mxu0
  %459 = vdwg.mxu0
  %v460 = vsel %vm54, %v266, -inf
  %461 = vmax.xlane.f32.xlu0 %v460
  %v462 = vpop.xlane.xlu0 %461
  %v463 = vsel %vm54, %v271, -inf
  %464 = vmax.xlane.f32.xlu0 %v463
  %v465 = vpop.xlane.xlu0 %464
  %v466 = vsel %vm54, %v276, -inf
  %467 = vmax.xlane.f32.xlu0 %v466
  %v468 = vpop.xlane.xlu0 %467
  %v469 = vsel %vm54, %v281, -inf
  %470 = vmax.xlane.f32.xlu0 %v469
  %v471 = vpop.xlane.xlu0 %470
  %v472 = vsub.f32 %v266, %v462
  %v473 = vsub.f32 %v271, %v465
  %v474 = vsub.f32 %v276, %v468
  %v475 = vsub.f32 %v281, %v471
  %v476 = vmul.f32 %v472, 1.442695
  %v477 = vpow.pop %v476
  %v478 = vmul.f32 %v473, 1.442695
  %v479 = vpow.pop %v478
  %v480 = vmul.f32 %v474, 1.442695
  %v481 = vpow.pop %v480
  %v482 = vmul.f32 %v475, 1.442695
  %v483 = vpow.pop %v482
  %v485 = vsel %vm54, %v477, 0
  %v488 = vsel %vm54, %v479, 0
  %v491 = vsel %vm54, %v481, 0
  %v494 = vsel %vm54, %v483, 0
  %496 = vmatprep.subr.mxu0 0.0
  %497 = vmatpush1.msra.mxu0 %v50
  %498 = vmatprep.subr.mxu0 0.0
  %499 = vmatpush1.msra.mxu0 %v51
  %500 = vmatprep.subr.mxu0 0.0
  %501 = vmatpush1.msra.mxu0 %v52
  %502 = vmatprep.subr.mxu0 0.0
  %503 = vmatpush1.msra.mxu0 %v53
  %504 = vmatprep.subr.mxu0 0.0
  %505 = vmatpush1.msra.mxu0 0.0
  %506 = vmatprep.subr.mxu0 0.0
  %507 = vmatpush1.msra.mxu0 0.0
  %508 = vmatprep.subr.mxu0 0.0
  %509 = vmatpush1.msra.mxu0 0.0
  %510 = vmatprep.subr.mxu0 0.0
  %511 = vmatpush1.msra.mxu0 0.0
  %512 = vmatprep.subr.mxu0 0.0
  %513 = vmatpush1.msra.mxu0 0.0
  %514 = vmatprep.subr.mxu0 0.0
  %515 = vmatpush1.msra.mxu0 0.0
  %516 = vmatprep.subr.mxu0 0.0
  %517 = vmatpush1.msra.mxu0 0.0
  %518 = vmatprep.subr.mxu0 0.0
  %519 = vmatpush1.msra.mxu0 0.0
  %520 = vmatprep.subr.mxu0 0.0
  %521 = vmatpush1.msra.mxu0 0.0
  %522 = vmatprep.subr.mxu0 0.0
  %523 = vmatpush1.msra.mxu0 0.0
  %524 = vmatprep.subr.mxu0 0.0
  %525 = vmatpush1.msra.mxu0 0.0
  %526 = vmatprep.subr.mxu0 0.0
  %527 = vmatpush1.msra.mxu0 0.0
  %528 = vmatprep.subr.mxu0 0.0
  %529 = vmatpush1.msra.mxu0 0.0
  %530 = vmatprep.subr.mxu0 0.0
  %531 = vmatpush1.msra.mxu0 0.0
  %532 = vmatprep.subr.mxu0 0.0
  %533 = vmatpush1.msra.mxu0 0.0
  %534 = vmatprep.subr.mxu0 0.0
  %535 = vmatpush1.msra.mxu0 0.0
  %536 = vmatprep.subr.mxu0 0.0
  %537 = vmatpush1.msra.mxu0 0.0
  %538 = vmatprep.subr.mxu0 0.0
  %539 = vmatpush1.msra.mxu0 0.0
  %540 = vmatprep.subr.mxu0 0.0
  %541 = vmatpush1.msra.mxu0 0.0
  %542 = vmatprep.subr.mxu0 0.0
  %543 = vmatpush1.msra.mxu0 0.0
  %544 = vmatprep.subr.mxu0 0.0
  %545 = vmatpush1.msra.mxu0 0.0
  %546 = vmatprep.subr.mxu0 0.0
  %547 = vmatpush1.msra.mxu0 0.0
  %548 = vmatprep.subr.mxu0 0.0
  %549 = vmatpush1.msra.mxu0 0.0
  %550 = vmatprep.subr.mxu0 0.0
  %551 = vmatpush1.msra.mxu0 0.0
  %552 = vmatprep.subr.mxu0 0.0
  %553 = vmatpush1.msra.mxu0 0.0
  %554 = vmatprep.subr.mxu0 0.0
  %555 = vmatpush1.msra.mxu0 0.0
  %556 = vmatprep.subr.mxu0 0.0
  %557 = vmatpush1.msra.mxu0 0.0
  %558 = vmatprep.subr.mxu0 0.0
  %559 = vmatpush1.msra.mxu0 0.0
  %560 = vmatprep.mubr.f32.mxu0 0.0
  %561 = vmatmul.mubr.f32.gmra.mrb[0].mxu0 %v485
  %v562 = vpop.f32.mrb[0].mxu0
  %v563 = vadd.f32 0.0, %v562
  %v564 = vpop.f32.mrb[0].mxu0
  %565 = vmatprep.mubr.f32.mxu0 0.0
  %566 = vmatmul.mubr.f32.gmra.mrb[0].mxu0 %v488
  %v567 = vpop.f32.mrb[0].mxu0
  %v568 = vadd.f32 0.0, %v567
  %v569 = vpop.f32.mrb[0].mxu0
  %570 = vmatprep.mubr.f32.mxu0 0.0
  %571 = vmatmul.mubr.f32.gmra.mrb[0].mxu0 %v491
  %v572 = vpop.f32.mrb[0].mxu0
  %v573 = vadd.f32 0.0, %v572
  %v574 = vpop.f32.mrb[0].mxu0
  %575 = vmatprep.mubr.f32.mxu0 0.0
  %576 = vmatmul.mubr.f32.gmra.mrb[0].mxu0 %v494
  %v577 = vpop.f32.mrb[0].mxu0
  %v578 = vadd.f32 0.0, %v577
  %v579 = vpop.f32.mrb[0].mxu0
  %580 = vdwg.mxu0
  %v581 = vmax.f32 %v563, 1e-30
  %v582 = vmax.f32 %v568, 1e-30
  %v583 = vmax.f32 %v573, 1e-30
  %v584 = vmax.f32 %v578, 1e-30
  %v585 = vrcp.pop %v581
  %v586 = vmul.f32 1.0, %v585
  %v587 = vrcp.pop %v582
  %v588 = vmul.f32 1.0, %v587
  %v589 = vrcp.pop %v583
  %v590 = vmul.f32 1.0, %v589
  %v591 = vrcp.pop %v584
  %v592 = vmul.f32 1.0, %v591
  %v593 = vmul.f32 %v477, %v586
  %v594 = vmul.f32 %v479, %v588
  %v595 = vmul.f32 %v481, %v590
  %v596 = vmul.f32 %v483, %v592
  %v597 = vsel %vm54, %v367, -inf
  %v598 = vrot.slane %v597, 4
  %v599 = vmax.f32 %v597, %v598
  %v600 = vrot.slane %v599, 2
  %v601 = vmax.f32 %v599, %v600
  %v602 = vrot.slane %v601, 1
  %v603 = vmax.f32 %v601, %v602
  %v604 = vsel %vm54, %v372, -inf
  %v605 = vrot.slane %v604, 4
  %v606 = vmax.f32 %v604, %v605
  %v607 = vrot.slane %v606, 2
  %v608 = vmax.f32 %v606, %v607
  %v609 = vrot.slane %v608, 1
  %v610 = vmax.f32 %v608, %v609
  %v611 = vsub.f32 %v367, %v603
  %v612 = vsub.f32 %v372, %v610
  %v613 = vmul.f32 %v611, 1.442695
  %v614 = vpow.pop %v613
  %v615 = vmul.f32 %v612, 1.442695
  %v616 = vpow.pop %v615
  %v617 = vsel %vm54, %v614, 0.0
  %v618 = vrot.slane %v617, 4
  %v619 = vadd.f32 %v617, %v618
  %v620 = vrot.slane %v619, 2
  %v621 = vadd.f32 %v619, %v620
  %v622 = vrot.slane %v621, 1
  %v623 = vadd.f32 %v621, %v622
  %v624 = vsel %vm54, %v616, 0.0
  %v625 = vrot.slane %v624, 4
  %v626 = vadd.f32 %v624, %v625
  %v627 = vrot.slane %v626, 2
  %v628 = vadd.f32 %v626, %v627
  %v629 = vrot.slane %v628, 1
  %v630 = vadd.f32 %v628, %v629
  %v631 = vrcp.pop %v623
  %v632 = vmul.f32 1.0, %v631
  %v633 = vrcp.pop %v630
  %v634 = vmul.f32 1.0, %v633
  %v635 = vmul.f32 %v614, %v632
  %v636 = vmul.f32 %v616, %v634
  %637 = vxpose.xlu0.b32.start [1/16] %v635, 128
  %638 = vxpose.xlu0.b32.cont [2/16] 0.0, 128
  %639 = vxpose.xlu0.b32.cont [3/16] 0.0, 128
  %640 = vxpose.xlu0.b32.cont [4/16] 0.0, 128
  %641 = vxpose.xlu0.b32.cont [5/16] 0.0, 128
  %642 = vxpose.xlu0.b32.cont [6/16] 0.0, 128
  %643 = vxpose.xlu0.b32.cont [7/16] 0.0, 128
  %644 = vxpose.xlu0.b32.cont [8/16] 0.0, 128
  %645 = vxpose.xlu0.b32.cont [9/16] 0.0, 128
  %646 = vxpose.xlu0.b32.cont [10/16] 0.0, 128
  %647 = vxpose.xlu0.b32.cont [11/16] 0.0, 128
  %648 = vxpose.xlu0.b32.cont [12/16] 0.0, 128
  %649 = vxpose.xlu0.b32.cont [13/16] 0.0, 128
  %650 = vxpose.xlu0.b32.cont [14/16] 0.0, 128
  %651 = vxpose.xlu0.b32.cont [15/16] 0.0, 128
  %652 = vxpose.xlu0.b32.end [16/16] 0.0, 128
  %v653 = vpop.trf.xlu0
  %v654 = vpop.trf.xlu0
  %v655 = vpop.trf.xlu0
  %v656 = vpop.trf.xlu0
  %v657 = vpop.trf.xlu0
  %v658 = vpop.trf.xlu0
  %v659 = vpop.trf.xlu0
  %v660 = vpop.trf.xlu0
  %v661 = vpop.trf.xlu0
  %v662 = vpop.trf.xlu0
  %v663 = vpop.trf.xlu0
  %v664 = vpop.trf.xlu0
  %v665 = vpop.trf.xlu0
  %v666 = vpop.trf.xlu0
  %v667 = vpop.trf.xlu0
  %v668 = vpop.trf.xlu0
  %vm669 = vcmask 64512
  %v671 = vsel %vm669, %v653, 0
  %v674 = vsel %vm669, %v654, 0
  %v677 = vsel %vm669, %v655, 0
  %v680 = vsel %vm669, %v656, 0
  %682 = vmatprep.subr.mxu0 0.0
  %683 = vmatpush1.msra.mxu0 %v452
  %684 = vmatprep.subr.mxu0 0.0
  %685 = vmatpush1.msra.mxu0 0.0
  %686 = vmatprep.subr.mxu0 0.0
  %687 = vmatpush1.msra.mxu0 0.0
  %688 = vmatprep.subr.mxu0 0.0
  %689 = vmatpush1.msra.mxu0 0.0
  %690 = vmatprep.subr.mxu0 0.0
  %691 = vmatpush1.msra.mxu0 0.0
  %692 = vmatprep.subr.mxu0 0.0
  %693 = vmatpush1.msra.mxu0 0.0
  %694 = vmatprep.subr.mxu0 0.0
  %695 = vmatpush1.msra.mxu0 0.0
  %696 = vmatprep.subr.mxu0 0.0
  %697 = vmatpush1.msra.mxu0 0.0
  %698 = vmatprep.subr.mxu0 0.0
  %699 = vmatpush1.msra.mxu0 0.0
  %700 = vmatprep.subr.mxu0 0.0
  %701 = vmatpush1.msra.mxu0 0.0
  %702 = vmatprep.subr.mxu0 0.0
  %703 = vmatpush1.msra.mxu0 0.0
  %704 = vmatprep.subr.mxu0 0.0
  %705 = vmatpush1.msra.mxu0 0.0
  %706 = vmatprep.subr.mxu0 0.0
  %707 = vmatpush1.msra.mxu0 0.0
  %708 = vmatprep.subr.mxu0 0.0
  %709 = vmatpush1.msra.mxu0 0.0
  %710 = vmatprep.subr.mxu0 0.0
  %711 = vmatpush1.msra.mxu0 0.0
  %712 = vmatprep.subr.mxu0 0.0
  %713 = vmatpush1.msra.mxu0 0.0
  %714 = vmatprep.subr.mxu0 0.0
  %715 = vmatpush1.msra.mxu0 0.0
  %716 = vmatprep.subr.mxu0 0.0
  %717 = vmatpush1.msra.mxu0 0.0
  %718 = vmatprep.subr.mxu0 0.0
  %719 = vmatpush1.msra.mxu0 0.0
  %720 = vmatprep.subr.mxu0 0.0
  %721 = vmatpush1.msra.mxu0 0.0
  %722 = vmatprep.subr.mxu0 0.0
  %723 = vmatpush1.msra.mxu0 0.0
  %724 = vmatprep.subr.mxu0 0.0
  %725 = vmatpush1.msra.mxu0 0.0
  %726 = vmatprep.subr.mxu0 0.0
  %727 = vmatpush1.msra.mxu0 0.0
  %728 = vmatprep.subr.mxu0 0.0
  %729 = vmatpush1.msra.mxu0 0.0
  %730 = vmatprep.subr.mxu0 0.0
  %731 = vmatpush1.msra.mxu0 0.0
  %732 = vmatprep.subr.mxu0 0.0
  %733 = vmatpush1.msra.mxu0 0.0
  %734 = vmatprep.subr.mxu0 0.0
  %735 = vmatpush1.msra.mxu0 0.0
  %736 = vmatprep.subr.mxu0 0.0
  %737 = vmatpush1.msra.mxu0 0.0
  %738 = vmatprep.subr.mxu0 0.0
  %739 = vmatpush1.msra.mxu0 0.0
  %740 = vmatprep.subr.mxu0 0.0
  %741 = vmatpush1.msra.mxu0 0.0
  %742 = vmatprep.subr.mxu0 0.0
  %743 = vmatpush1.msra.mxu0 0.0
  %744 = vmatprep.subr.mxu0 0.0
  %745 = vmatpush1.msra.mxu0 0.0
  %746 = vmatprep.mubr.f32.mxu0 0.0
  %747 = vmatmul.mubr.f32.gmra.mrb[0].mxu0 %v671
  %v748 = vpop.f32.mrb[0].mxu0
  %v749 = vadd.f32 0.0, %v748
  %v750 = vpop.f32.mrb[0].mxu0
  %751 = vmatprep.mubr.f32.mxu0 0.0
  %752 = vmatmul.mubr.f32.gmra.mrb[0].mxu0 %v674
  %v753 = vpop.f32.mrb[0].mxu0
  %v754 = vadd.f32 0.0, %v753
  %v755 = vpop.f32.mrb[0].mxu0
  %756 = vmatprep.mubr.f32.mxu0 0.0
  %757 = vmatmul.mubr.f32.gmra.mrb[0].mxu0 %v677
  %v758 = vpop.f32.mrb[0].mxu0
  %v759 = vadd.f32 0.0, %v758
  %v760 = vpop.f32.mrb[0].mxu0
  %761 = vmatprep.mubr.f32.mxu0 0.0
  %762 = vmatmul.mubr.f32.gmra.mrb[0].mxu0 %v680
  %v763 = vpop.f32.mrb[0].mxu0
  %v764 = vadd.f32 0.0, %v763
  %v765 = vpop.f32.mrb[0].mxu0
  %766 = vdwg.mxu0
  %767 = vxpose.xlu0.b32.start [1/16] %v636, 128
  %768 = vxpose.xlu0.b32.cont [2/16] 0.0, 128
  %769 = vxpose.xlu0.b32.cont [3/16] 0.0, 128
  %770 = vxpose.xlu0.b32.cont [4/16] 0.0, 128
  %771 = vxpose.xlu0.b32.cont [5/16] 0.0, 128
  %772 = vxpose.xlu0.b32.cont [6/16] 0.0, 128
  %773 = vxpose.xlu0.b32.cont [7/16] 0.0, 128
  %774 = vxpose.xlu0.b32.cont [8/16] 0.0, 128
  %775 = vxpose.xlu0.b32.cont [9/16] 0.0, 128
  %776 = vxpose.xlu0.b32.cont [10/16] 0.0, 128
  %777 = vxpose.xlu0.b32.cont [11/16] 0.0, 128
  %778 = vxpose.xlu0.b32.cont [12/16] 0.0, 128
  %779 = vxpose.xlu0.b32.cont [13/16] 0.0, 128
  %780 = vxpose.xlu0.b32.cont [14/16] 0.0, 128
  %781 = vxpose.xlu0.b32.cont [15/16] 0.0, 128
  %782 = vxpose.xlu0.b32.end [16/16] 0.0, 128
  %v783 = vpop.trf.xlu0
  %v784 = vpop.trf.xlu0
  %v785 = vpop.trf.xlu0
  %v786 = vpop.trf.xlu0
  %v787 = vpop.trf.xlu0
  %v788 = vpop.trf.xlu0
  %v789 = vpop.trf.xlu0
  %v790 = vpop.trf.xlu0
  %v791 = vpop.trf.xlu0
  %v792 = vpop.trf.xlu0
  %v793 = vpop.trf.xlu0
  %v794 = vpop.trf.xlu0
  %v795 = vpop.trf.xlu0
  %v796 = vpop.trf.xlu0
  %v797 = vpop.trf.xlu0
  %v798 = vpop.trf.xlu0
  %v800 = vsel %vm669, %v783, 0
  %v803 = vsel %vm669, %v784, 0
  %v806 = vsel %vm669, %v785, 0
  %v809 = vsel %vm669, %v786, 0
  %811 = vmatprep.subr.mxu0 0.0
  %812 = vmatpush1.msra.mxu0 %v457
  %813 = vmatprep.subr.mxu0 0.0
  %814 = vmatpush1.msra.mxu0 0.0
  %815 = vmatprep.subr.mxu0 0.0
  %816 = vmatpush1.msra.mxu0 0.0
  %817 = vmatprep.subr.mxu0 0.0
  %818 = vmatpush1.msra.mxu0 0.0
  %819 = vmatprep.subr.mxu0 0.0
  %820 = vmatpush1.msra.mxu0 0.0
  %821 = vmatprep.subr.mxu0 0.0
  %822 = vmatpush1.msra.mxu0 0.0
  %823 = vmatprep.subr.mxu0 0.0
  %824 = vmatpush1.msra.mxu0 0.0
  %825 = vmatprep.subr.mxu0 0.0
  %826 = vmatpush1.msra.mxu0 0.0
  %827 = vmatprep.subr.mxu0 0.0
  %828 = vmatpush1.msra.mxu0 0.0
  %829 = vmatprep.subr.mxu0 0.0
  %830 = vmatpush1.msra.mxu0 0.0
  %831 = vmatprep.subr.mxu0 0.0
  %832 = vmatpush1.msra.mxu0 0.0
  %833 = vmatprep.subr.mxu0 0.0
  %834 = vmatpush1.msra.mxu0 0.0
  %835 = vmatprep.subr.mxu0 0.0
  %836 = vmatpush1.msra.mxu0 0.0
  %837 = vmatprep.subr.mxu0 0.0
  %838 = vmatpush1.msra.mxu0 0.0
  %839 = vmatprep.subr.mxu0 0.0
  %840 = vmatpush1.msra.mxu0 0.0
  %841 = vmatprep.subr.mxu0 0.0
  %842 = vmatpush1.msra.mxu0 0.0
  %843 = vmatprep.subr.mxu0 0.0
  %844 = vmatpush1.msra.mxu0 0.0
  %845 = vmatprep.subr.mxu0 0.0
  %846 = vmatpush1.msra.mxu0 0.0
  %847 = vmatprep.subr.mxu0 0.0
  %848 = vmatpush1.msra.mxu0 0.0
  %849 = vmatprep.subr.mxu0 0.0
  %850 = vmatpush1.msra.mxu0 0.0
  %851 = vmatprep.subr.mxu0 0.0
  %852 = vmatpush1.msra.mxu0 0.0
  %853 = vmatprep.subr.mxu0 0.0
  %854 = vmatpush1.msra.mxu0 0.0
  %855 = vmatprep.subr.mxu0 0.0
  %856 = vmatpush1.msra.mxu0 0.0
  %857 = vmatprep.subr.mxu0 0.0
  %858 = vmatpush1.msra.mxu0 0.0
  %859 = vmatprep.subr.mxu0 0.0
  %860 = vmatpush1.msra.mxu0 0.0
  %861 = vmatprep.subr.mxu0 0.0
  %862 = vmatpush1.msra.mxu0 0.0
  %863 = vmatprep.subr.mxu0 0.0
  %864 = vmatpush1.msra.mxu0 0.0
  %865 = vmatprep.subr.mxu0 0.0
  %866 = vmatpush1.msra.mxu0 0.0
  %867 = vmatprep.subr.mxu0 0.0
  %868 = vmatpush1.msra.mxu0 0.0
  %869 = vmatprep.subr.mxu0 0.0
  %870 = vmatpush1.msra.mxu0 0.0
  %871 = vmatprep.subr.mxu0 0.0
  %872 = vmatpush1.msra.mxu0 0.0
  %873 = vmatprep.subr.mxu0 0.0
  %874 = vmatpush1.msra.mxu0 0.0
  %875 = vmatprep.mubr.f32.mxu0 0.0
  %876 = vmatmul.mubr.f32.gmra.mrb[0].mxu0 %v800
  %v877 = vpop.f32.mrb[0].mxu0
  %v878 = vadd.f32 0.0, %v877
  %v879 = vpop.f32.mrb[0].mxu0
  %880 = vmatprep.mubr.f32.mxu0 0.0
  %881 = vmatmul.mubr.f32.gmra.mrb[0].mxu0 %v803
  %v882 = vpop.f32.mrb[0].mxu0
  %v883 = vadd.f32 0.0, %v882
  %v884 = vpop.f32.mrb[0].mxu0
  %885 = vmatprep.mubr.f32.mxu0 0.0
  %886 = vmatmul.mubr.f32.gmra.mrb[0].mxu0 %v806
  %v887 = vpop.f32.mrb[0].mxu0
  %v888 = vadd.f32 0.0, %v887
  %v889 = vpop.f32.mrb[0].mxu0
  %890 = vmatprep.mubr.f32.mxu0 0.0
  %891 = vmatmul.mubr.f32.gmra.mrb[0].mxu0 %v809
  %v892 = vpop.f32.mrb[0].mxu0
  %v893 = vadd.f32 0.0, %v892
  %v894 = vpop.f32.mrb[0].mxu0
  %895 = vdwg.mxu0
  %v896 = vmul.f32 %v749, %v50
  %v897 = vmul.f32 %v754, %v51
  %v898 = vmul.f32 %v759, %v52
  %v899 = vmul.f32 %v764, %v53
  %v900 = vmul.f32 %v878, %v50
  %v901 = vmul.f32 %v883, %v51
  %v902 = vmul.f32 %v888, %v52
  %v903 = vmul.f32 %v893, %v53
  %v905 = vsel %vm54, %v593, 0
  %v908 = vsel %vm54, %v594, 0
  %910 = vmatprep.subr.mxu0 0.0
  %911 = vmatpush1.msra.mxu0 %v896
  %912 = vmatprep.subr.mxu0 0.0
  %913 = vmatpush1.msra.mxu0 %v897
  %914 = vmatprep.subr.mxu0 0.0
  %915 = vmatpush1.msra.mxu0 %v898
  %916 = vmatprep.subr.mxu0 0.0
  %917 = vmatpush1.msra.mxu0 %v899
  %918 = vmatprep.subr.mxu0 0.0
  %919 = vmatpush1.msra.mxu0 0.0
  %920 = vmatprep.subr.mxu0 0.0
  %921 = vmatpush1.msra.mxu0 0.0
  %922 = vmatprep.subr.mxu0 0.0
  %923 = vmatpush1.msra.mxu0 0.0
  %924 = vmatprep.subr.mxu0 0.0
  %925 = vmatpush1.msra.mxu0 0.0
  %926 = vmatprep.subr.mxu0 0.0
  %927 = vmatpush1.msra.mxu0 0.0
  %928 = vmatprep.subr.mxu0 0.0
  %929 = vmatpush1.msra.mxu0 0.0
  %930 = vmatprep.subr.mxu0 0.0
  %931 = vmatpush1.msra.mxu0 0.0
  %932 = vmatprep.subr.mxu0 0.0
  %933 = vmatpush1.msra.mxu0 0.0
  %934 = vmatprep.subr.mxu0 0.0
  %935 = vmatpush1.msra.mxu0 0.0
  %936 = vmatprep.subr.mxu0 0.0
  %937 = vmatpush1.msra.mxu0 0.0
  %938 = vmatprep.subr.mxu0 0.0
  %939 = vmatpush1.msra.mxu0 0.0
  %940 = vmatprep.subr.mxu0 0.0
  %941 = vmatpush1.msra.mxu0 0.0
  %942 = vmatprep.subr.mxu0 0.0
  %943 = vmatpush1.msra.mxu0 0.0
  %944 = vmatprep.subr.mxu0 0.0
  %945 = vmatpush1.msra.mxu0 0.0
  %946 = vmatprep.subr.mxu0 0.0
  %947 = vmatpush1.msra.mxu0 0.0
  %948 = vmatprep.subr.mxu0 0.0
  %949 = vmatpush1.msra.mxu0 0.0
  %950 = vmatprep.subr.mxu0 0.0
  %951 = vmatpush1.msra.mxu0 0.0
  %952 = vmatprep.subr.mxu0 0.0
  %953 = vmatpush1.msra.mxu0 0.0
  %954 = vmatprep.subr.mxu0 0.0
  %955 = vmatpush1.msra.mxu0 0.0
  %956 = vmatprep.subr.mxu0 0.0
  %957 = vmatpush1.msra.mxu0 0.0
  %958 = vmatprep.subr.mxu0 0.0
  %959 = vmatpush1.msra.mxu0 0.0
  %960 = vmatprep.subr.mxu0 0.0
  %961 = vmatpush1.msra.mxu0 0.0
  %962 = vmatprep.subr.mxu0 0.0
  %963 = vmatpush1.msra.mxu0 0.0
  %964 = vmatprep.subr.mxu0 0.0
  %965 = vmatpush1.msra.mxu0 0.0
  %966 = vmatprep.subr.mxu0 0.0
  %967 = vmatpush1.msra.mxu0 0.0
  %968 = vmatprep.subr.mxu0 0.0
  %969 = vmatpush1.msra.mxu0 0.0
  %970 = vmatprep.subr.mxu0 0.0
  %971 = vmatpush1.msra.mxu0 0.0
  %972 = vmatprep.subr.mxu0 0.0
  %973 = vmatpush1.msra.mxu0 0.0
  %974 = vmatprep.mubr.f32.mxu0 0.0
  %975 = vmatmul.mubr.f32.gmra.mrb[0].mxu0 %v905
  %v976 = vpop.f32.mrb[0].mxu0
  %v977 = vadd.f32 0.0, %v976
  %v978 = vpop.f32.mrb[0].mxu0
  %979 = vmatprep.mubr.f32.mxu0 0.0
  %980 = vmatmul.mubr.f32.gmra.mrb[0].mxu0 %v908
  %v981 = vpop.f32.mrb[0].mxu0
  %v982 = vadd.f32 0.0, %v981
  %v983 = vpop.f32.mrb[0].mxu0
  %984 = vdwg.mxu0
  %v986 = vsel %vm54, %v595, 0
  %v989 = vsel %vm54, %v596, 0
  %991 = vmatprep.subr.mxu0 0.0
  %992 = vmatpush1.msra.mxu0 %v900
  %993 = vmatprep.subr.mxu0 0.0
  %994 = vmatpush1.msra.mxu0 %v901
  %995 = vmatprep.subr.mxu0 0.0
  %996 = vmatpush1.msra.mxu0 %v902
  %997 = vmatprep.subr.mxu0 0.0
  %998 = vmatpush1.msra.mxu0 %v903
  %999 = vmatprep.subr.mxu0 0.0
  %1000 = vmatpush1.msra.mxu0 0.0
  %1001 = vmatprep.subr.mxu0 0.0
  %1002 = vmatpush1.msra.mxu0 0.0
  %1003 = vmatprep.subr.mxu0 0.0
  %1004 = vmatpush1.msra.mxu0 0.0
  %1005 = vmatprep.subr.mxu0 0.0
  %1006 = vmatpush1.msra.mxu0 0.0
  %1007 = vmatprep.subr.mxu0 0.0
  %1008 = vmatpush1.msra.mxu0 0.0
  %1009 = vmatprep.subr.mxu0 0.0
  %1010 = vmatpush1.msra.mxu0 0.0
  %1011 = vmatprep.subr.mxu0 0.0
  %1012 = vmatpush1.msra.mxu0 0.0
  %1013 = vmatprep.subr.mxu0 0.0
  %1014 = vmatpush1.msra.mxu0 0.0
  %1015 = vmatprep.subr.mxu0 0.0
  %1016 = vmatpush1.msra.mxu0 0.0
  %1017 = vmatprep.subr.mxu0 0.0
  %1018 = vmatpush1.msra.mxu0 0.0
  %1019 = vmatprep.subr.mxu0 0.0
  %1020 = vmatpush1.msra.mxu0 0.0
  %1021 = vmatprep.subr.mxu0 0.0
  %1022 = vmatpush1.msra.mxu0 0.0
  %1023 = vmatprep.subr.mxu0 0.0
  %1024 = vmatpush1.msra.mxu0 0.0
  %1025 = vmatprep.subr.mxu0 0.0
  %1026 = vmatpush1.msra.mxu0 0.0
  %1027 = vmatprep.subr.mxu0 0.0
  %1028 = vmatpush1.msra.mxu0 0.0
  %1029 = vmatprep.subr.mxu0 0.0
  %1030 = vmatpush1.msra.mxu0 0.0
  %1031 = vmatprep.subr.mxu0 0.0
  %1032 = vmatpush1.msra.mxu0 0.0
  %1033 = vmatprep.subr.mxu0 0.0
  %1034 = vmatpush1.msra.mxu0 0.0
  %1035 = vmatprep.subr.mxu0 0.0
  %1036 = vmatpush1.msra.mxu0 0.0
  %1037 = vmatprep.subr.mxu0 0.0
  %1038 = vmatpush1.msra.mxu0 0.0
  %1039 = vmatprep.subr.mxu0 0.0
  %1040 = vmatpush1.msra.mxu0 0.0
  %1041 = vmatprep.subr.mxu0 0.0
  %1042 = vmatpush1.msra.mxu0 0.0
  %1043 = vmatprep.subr.mxu0 0.0
  %1044 = vmatpush1.msra.mxu0 0.0
  %1045 = vmatprep.subr.mxu0 0.0
  %1046 = vmatpush1.msra.mxu0 0.0
  %1047 = vmatprep.subr.mxu0 0.0
  %1048 = vmatpush1.msra.mxu0 0.0
  %1049 = vmatprep.subr.mxu0 0.0
  %1050 = vmatpush1.msra.mxu0 0.0
  %1051 = vmatprep.subr.mxu0 0.0
  %1052 = vmatpush1.msra.mxu0 0.0
  %1053 = vmatprep.subr.mxu0 0.0
  %1054 = vmatpush1.msra.mxu0 0.0
  %1055 = vmatprep.mubr.f32.mxu0 0.0
  %1056 = vmatmul.mubr.f32.gmra.mrb[0].mxu0 %v986
  %v1057 = vpop.f32.mrb[0].mxu0
  %v1058 = vadd.f32 0.0, %v1057
  %v1059 = vpop.f32.mrb[0].mxu0
  %1060 = vmatprep.mubr.f32.mxu0 0.0
  %1061 = vmatmul.mubr.f32.gmra.mrb[0].mxu0 %v989
  %v1062 = vpop.f32.mrb[0].mxu0
  %v1063 = vadd.f32 0.0, %v1062
  %v1064 = vpop.f32.mrb[0].mxu0
  %1065 = vdwg.mxu0
  %v1066 = vadd.f32 %v44, %v977
  %v1067 = vadd.f32 %v45, %v982
  %v1068 = vadd.f32 %v46, %v1058
  %v1069 = vadd.f32 %v47, %v1063
  %1070 = vst.msk [vmem:[%s13] sm:$0xff] %vm54, %v1066
  %1071 = vst.msk [vmem:[%s13 + $0x8] sm:$0xff] %vm54, %v1067
  %1072 = vst.msk [vmem:[%s13 + $0x10] sm:$0xff] %vm54, %v1068
  %1073 = vst.msk [vmem:[%s13 + $0x18] sm:$0xff] %vm54, %v1069
  // Predicated region
  $region54: #{residual_cross_attention_layer.1} parent=0 // pred_check
    _
  $region55: #{residual_cross_attention_layer.1} parent=0 // pred_check_branch
    %1075 = sbr.rel (0) target = $region57
  $region56: #{residual_cross_attention_layer.1} parent=0 // pred_region
    _
  $region57: #{residual_cross_attention_layer.1} parent=0 // pred_fallthru
    _
  // Predicated region
  $region58: #{residual_cross_attention_layer.1} parent=0 // pred_check
    _
  $region59: #{residual_cross_attention_layer.1} parent=0 // pred_check_branch
    %1077 = sbr.rel (0) target = $region61
  $region60: #{residual_cross_attention_layer.1} parent=0 // pred_region
    _
  $region61: #{residual_cross_attention_layer.1} parent=0 // pred_fallthru
    _

</llo_original>
